<compile_context>
chip_gen: v5e
topology: v5e:2x2
jax: 0.10.0
libtpu: 0.0.40
codegen_flags: <defaults>
</compile_context>

<pallas_src>
import jax
import jax.numpy as jnp
from jax.experimental import pallas as pl
from jax.experimental.pallas import tpu as pltpu


# ----------------------------------------------------------------------------
# Static chip detection (trace-time only; never inside the kernel)
# ----------------------------------------------------------------------------
def _tpu_generation():
    """Best-effort 'v5' / 'v6' / 'v7' from the device kind, else None."""
    try:
        kind = jax.devices()[0].device_kind.lower()
    except Exception:
        return None
    if "v5" in kind:
        return "v5"
    if "v6" in kind:
        return "v6"
    if "v7" in kind or "tpu7" in kind or "7x" in kind:
        return "v7"
    return None


# ----------------------------------------------------------------------------
# Kernel (parameterized by static shapes / variant via closure)
# ----------------------------------------------------------------------------
def _make_kernel(feature_dim, action_dim, hidden_dim, split_layer2):
    F, A, H = feature_dim, action_dim, hidden_dim
    D = F + A

    def kernel(obs_ref, act_ref, w1_ref, b12_ref, w2_ref, w3_ref, b3_ref,
               q_ref, x_ref):
        # ---- Layer 1: pack obs|act into one lane-dense bf16 operand and do a
        #      single K=D matmul (replaces concat / two half-K dots).
        x_ref[:, 0:F] = obs_ref[...].astype(jnp.bfloat16)
        x_ref[:, F:D] = act_ref[...].astype(jnp.bfloat16)
        h = (jnp.dot(x_ref[...], w1_ref[...],
                     preferred_element_type=jnp.float32)
             + b12_ref[0:1, :])
        h = jnp.maximum(h, 0.0)
        hb = h.astype(jnp.bfloat16)

        # ---- Layer 2.
        if split_layer2:
            # v5e (128x128 MXU): two per-critic (tile_b,H)@(H,H) dots — skips
            # the zero off-diagonal blocks of the fused weight.
            g1 = jnp.dot(hb[:, :H], w2_ref[0],
                         preferred_element_type=jnp.float32)
            g2 = jnp.dot(hb[:, H:], w2_ref[1],
                         preferred_element_type=jnp.float32)
            g = jnp.concatenate([g1, g2], axis=1)
        else:
            # v6e / v7x (256x256 MXU): one fused block-diagonal (2H,2H) dot.
            g = jnp.dot(hb, w2_ref[...], preferred_element_type=jnp.float32)
        g = jnp.maximum(g + b12_ref[1:2, :], 0.0)

        # ---- Layer 3: fused (2H, 2) weight -> one (B, 2) output (q1 | q2).
        q = (jnp.dot(g.astype(jnp.bfloat16), w3_ref[...],
                     preferred_element_type=jnp.float32)
             + b3_ref[...])
        q_ref[...] = q.astype(q_ref.dtype)

    return kernel


# ----------------------------------------------------------------------------
# Parameter packing (fuses the two critics; bf16 weights, f32 biases)
# ----------------------------------------------------------------------------
def pack_double_critic_params(params, split_layer2=False):
    p1, p2 = params["q1"], params["q2"]
    H = p1["w2"].shape[0]

    w1 = jnp.concatenate([p1["w1"], p2["w1"]], axis=1).astype(jnp.bfloat16)  # (D,2H)

    b1 = jnp.concatenate([p1["b1"], p2["b1"]], axis=1)                        # (1,2H)
    b2 = jnp.concatenate([p1["b2"], p2["b2"]], axis=1)                        # (1,2H)
    b12 = jnp.concatenate([b1, b2], axis=0).astype(jnp.float32)               # (2,2H)

    if split_layer2:
        w2 = jnp.stack([p1["w2"], p2["w2"]], axis=0).astype(jnp.bfloat16)     # (2,H,H)
    else:
        z = jnp.zeros((H, H), jnp.float32)
        w2 = jnp.block([[p1["w2"], z],
                        [z, p2["w2"]]]).astype(jnp.bfloat16)                  # (2H,2H)

    z1 = jnp.zeros((H, 1), jnp.float32)
    w3 = jnp.block([[p1["w3"], z1],
                    [z1, p2["w3"]]]).astype(jnp.bfloat16)                     # (2H,2)
    b3 = jnp.concatenate([p1["b3"], p2["b3"]], axis=1).astype(jnp.float32)    # (1,2)

    return {"w1": w1, "b12": b12, "w2": w2, "w3": w3, "b3": b3}


# ----------------------------------------------------------------------------
# Tiling
# ----------------------------------------------------------------------------
def _pick_batch_tile(batch, in_dim, h2, want_two_steps=False, max_tile=4096):
    """Large batch tile (amortizes ~0.35us/step grid overhead), capped so each
    (tile, 2H) f32 intermediate stays ~<=4 MiB and double-buffered f32 input
    blocks stay ~<=16 MiB; ragged cdiv last block handles non-divisible B."""
    cap_act = (4 * 1024 * 1024) // (4 * max(h2, 1))
    cap_in = (16 * 1024 * 1024) // (16 * max(in_dim, 1))
    tile = max(8, min(max_tile, cap_act, cap_in))
    tile = (tile // 8) * 8
    if batch <= tile:
        if want_two_steps and batch >= 16:
            half = (batch + 1) // 2          # >=2 grid steps -> both v7x TCs
            return ((half + 7) // 8) * 8
        return batch
    return tile


# ----------------------------------------------------------------------------
# Forward wrapper
# ----------------------------------------------------------------------------
def double_critic_forward(obs, action, packed):
    B, F = obs.shape
    A = action.shape[1]
    D = F + A

    split_layer2 = (packed["w2"].ndim == 3)
    H = packed["w2"].shape[-1] if split_layer2 else packed["w2"].shape[0] // 2
    H2 = 2 * H

    gen = _tpu_generation()
    tile_b = _pick_batch_tile(B, D, H2, want_two_steps=(gen == "v7"))
    grid = (pl.cdiv(B, tile_b),)

    batch_map = lambda i: (i, 0)
    const2 = lambda i: (0, 0)            # weights/biases resident across steps
    w2_spec = (pl.BlockSpec((2, H, H), lambda i: (0, 0, 0)) if split_layer2
               else pl.BlockSpec((H2, H2), const2))

    kernel = _make_kernel(F, A, H, split_layer2)

    # Advisory cost estimate so XLA schedules neighbours (e.g. encoder) sanely.
    l2_flops = 2 * B * (2 * H * H if split_layer2 else H2 * H2)
    flops = 2 * B * D * H2 + l2_flops + 2 * B * H2 * 2
    weight_bytes = sum(int(v.size) * v.dtype.itemsize for v in packed.values())
    bytes_accessed = (int(obs.size) * obs.dtype.itemsize
                      + int(action.size) * action.dtype.itemsize
                      + weight_bytes + B * 2 * 4)
    cost = pl.CostEstimate(flops=flops, transcendentals=0,
                           bytes_accessed=bytes_accessed)

    q12 = pl.pallas_call(
        kernel,
        out_shape=jax.ShapeDtypeStruct((B, 2), jnp.float32),
        grid=grid,
        in_specs=[
            pl.BlockSpec((tile_b, F), batch_map),     # obs
            pl.BlockSpec((tile_b, A), batch_map),     # action
            pl.BlockSpec((D, H2), const2),            # w1 (fused, bf16)
            pl.BlockSpec((2, H2), const2),            # b1|b2
            w2_spec,                                  # w2 (fused or stacked)
            pl.BlockSpec((H2, 2), const2),            # w3 (fused)
            pl.BlockSpec((1, 2), const2),             # b3
        ],
        out_specs=pl.BlockSpec((tile_b, 2), batch_map),
        scratch_shapes=[pltpu.VMEM((tile_b, D), jnp.bfloat16)],  # packed obs|act
        compiler_params=pltpu.CompilerParams(
            dimension_semantics=("parallel",),
            vmem_limit_bytes=64 * 1024 * 1024),
        cost_estimate=cost,
    )(obs, action, packed["w1"], packed["b12"], packed["w2"],
      packed["w3"], packed["b3"])

    return q12[:, 0:1], q12[:, 1:2]


# ----------------------------------------------------------------------------
# Init (PyTorch nn.Linear semantics; weights stored transposed (in, out))
# ----------------------------------------------------------------------------
def _init_linear(key, fan_in, fan_out):
    kw, kb = jax.random.split(key)
    bound = 1.0 / jnp.sqrt(jnp.float32(fan_in))
    w = jax.random.uniform(kw, (fan_in, fan_out), jnp.float32, -bound, bound)
    b = jax.random.uniform(kb, (1, fan_out), jnp.float32, -bound, bound)
    return w, b


def init_double_critic(key, action_dim, feature_dim, hidden_dim):
    d_in = feature_dim + action_dim
    keys = jax.random.split(key, 6)
    w1a, b1a = _init_linear(keys[0], d_in, hidden_dim)
    w2a, b2a = _init_linear(keys[1], hidden_dim, hidden_dim)
    w3a, b3a = _init_linear(keys[2], hidden_dim, 1)
    w1b, b1b = _init_linear(keys[3], d_in, hidden_dim)
    w2b, b2b = _init_linear(keys[4], hidden_dim, hidden_dim)
    w3b, b3b = _init_linear(keys[5], hidden_dim, 1)
    return {
        "q1": {"w1": w1a, "b1": b1a, "w2": w2a, "b2": b2a, "w3": w3a, "b3": b3a},
        "q2": {"w1": w1b, "b1": b1b, "w2": w2b, "b2": b2b, "w3": w3b, "b3": b3b},
    }


# ----------------------------------------------------------------------------
# References
# ----------------------------------------------------------------------------
def _reference_forward_f32(obs, action, params):
    """Exact PyTorch-semantics forward in f32 (unfused)."""
    x = jnp.concatenate([obs, action], axis=-1)

    def mlp(p):
        h = jnp.maximum(x @ p["w1"] + p["b1"], 0.0)
        h = jnp.maximum(h @ p["w2"] + p["b2"], 0.0)
        return h @ p["w3"] + p["b3"]

    return mlp(params["q1"]), mlp(params["q2"])


def _reference_forward_bf16(obs, action, params):
    """Unfused forward with the kernel's bf16-operand / f32-accum quantization;
    verifies the fusion / block-diagonal packing exactly."""
    x = jnp.concatenate([obs, action], axis=-1).astype(jnp.bfloat16)

    def mlp(p):
        h = (jnp.dot(x, p["w1"].astype(jnp.bfloat16),
                     preferred_element_type=jnp.float32) + p["b1"])
        h = jnp.maximum(h, 0.0)
        h = (jnp.dot(h.astype(jnp.bfloat16), p["w2"].astype(jnp.bfloat16),
                     preferred_element_type=jnp.float32) + p["b2"])
        h = jnp.maximum(h, 0.0)
        return (jnp.dot(h.astype(jnp.bfloat16), p["w3"].astype(jnp.bfloat16),
                        preferred_element_type=jnp.float32) + p["b3"])

    return mlp(params["q1"]), mlp(params["q2"])


# ----------------------------------------------------------------------------
# Demo / self-test
# ----------------------------------------------------------------------------
if __name__ == "__main__":
    batch = 8
    feature_dim = 64
    action_dim = 64
    hidden_dim = 128

    key = jax.random.PRNGKey(0)
    k_obs, k_act, k_params = jax.random.split(key, 3)

    obs = jax.random.normal(k_obs, (batch, feature_dim), jnp.float32)
    action = jax.random.normal(k_act, (batch, action_dim), jnp.float32)
    params = init_double_critic(k_params, action_dim, feature_dim, hidden_dim)

    q1_bf, q2_bf = _reference_forward_bf16(obs, action, params)
    q1_f32, q2_f32 = _reference_forward_f32(obs, action, params)

    gen = _tpu_generation()
    default_split = (gen == "v5") and (hidden_dim % 128 == 0)

    # Exercise BOTH layer-2 variants (fused block-diag and per-critic split);
    # the chip-appropriate one (default_split) is what production would use.
    for split in (default_split, not default_split):
        packed = pack_double_critic_params(params, split_layer2=split)
        q1, q2 = double_critic_forward(obs, action, packed)
        jax.block_until_ready((q1, q2))
        assert q1.shape == (batch, 1) and q2.shape == (batch, 1)

        # Tight check vs the bf16-quantized reference (fusion math is exact).
        assert jnp.allclose(q1, q1_bf, atol=2e-3, rtol=2e-3)
        assert jnp.allclose(q2, q2_bf, atol=2e-3, rtol=2e-3)

        # Loose check vs exact f32 PyTorch semantics (bf16 rounding only).
        assert jnp.allclose(q1, q1_f32, atol=5e-2, rtol=5e-2)
        assert jnp.allclose(q2, q2_f32, atol=5e-2, rtol=5e-2)

    print("KERNEL_OK")
</pallas_src>

<mosaic_0001>
module attributes {stable_mosaic.version = 11 : i64} {
  func.func @kernel(%arg0: i32, %arg1: memref<8x64xf32, #tpu.memory_space<vmem>>, %arg2: memref<8x64xf32, #tpu.memory_space<vmem>>, %arg3: memref<128x256xbf16, #tpu.memory_space<vmem>>, %arg4: memref<2x256xf32, #tpu.memory_space<vmem>>, %arg5: memref<256x256xbf16, #tpu.memory_space<vmem>>, %arg6: memref<256x2xbf16, #tpu.memory_space<vmem>>, %arg7: memref<1x2xf32, #tpu.memory_space<vmem>>, %arg8: memref<8x2xf32, #tpu.memory_space<vmem>>, %arg9: memref<8x128xbf16, #tpu.memory_space<vmem>>) attributes {dimension_semantics = [#tpu.dimension_semantics<parallel>], iteration_bounds = array<i64: 1>, scalar_prefetch = 0 : i64, scratch_operands = 1 : i64, tpu.core_type = #tpu.core_type<tc>, window_params = [{transform_indices = @transform_0, window_bounds = array<i64: 8, 64>}, {transform_indices = @transform_1, window_bounds = array<i64: 8, 64>}, {pipeline_mode = #tpu.pipeline_mode<synchronous>, transform_indices = @transform_2, window_bounds = array<i64: 128, 256>}, {pipeline_mode = #tpu.pipeline_mode<synchronous>, transform_indices = @transform_3, window_bounds = array<i64: 2, 256>}, {pipeline_mode = #tpu.pipeline_mode<synchronous>, transform_indices = @transform_4, window_bounds = array<i64: 256, 256>}, {pipeline_mode = #tpu.pipeline_mode<synchronous>, transform_indices = @transform_5, window_bounds = array<i64: 256, 2>}, {pipeline_mode = #tpu.pipeline_mode<synchronous>, transform_indices = @transform_6, window_bounds = array<i64: 1, 2>}, {transform_indices = @transform_7, window_bounds = array<i64: 8, 2>}]} {
    %c0 = arith.constant 0 : index
    %c0_0 = arith.constant 0 : index
    %0 = vector.load %arg1[%c0, %c0_0] : memref<8x64xf32, #tpu.memory_space<vmem>>, vector<8x64xf32>
    %1 = arith.truncf %0 : vector<8x64xf32> to vector<8x64xbf16>
    %c0_1 = arith.constant 0 : index
    %c0_2 = arith.constant 0 : index
    %2 = vector.load %arg9[%c0_1, %c0_2] : memref<8x128xbf16, #tpu.memory_space<vmem>>, vector<8x64xbf16>
    tpu.vector_store %arg9[%c0_1, %c0_2], %1 {strides = array<i32>} : memref<8x128xbf16, #tpu.memory_space<vmem>>, vector<8x64xbf16>,
    %c0_3 = arith.constant 0 : index
    %c0_4 = arith.constant 0 : index
    %3 = vector.load %arg2[%c0_3, %c0_4] : memref<8x64xf32, #tpu.memory_space<vmem>>, vector<8x64xf32>
    %4 = arith.truncf %3 : vector<8x64xf32> to vector<8x64xbf16>
    %c0_5 = arith.constant 0 : index
    %c64 = arith.constant 64 : index
    %5 = vector.load %arg9[%c0_5, %c64] : memref<8x128xbf16, #tpu.memory_space<vmem>>, vector<8x64xbf16>
    tpu.vector_store %arg9[%c0_5, %c64], %4 {strides = array<i32>} : memref<8x128xbf16, #tpu.memory_space<vmem>>, vector<8x64xbf16>,
    %c0_6 = arith.constant 0 : index
    %c0_7 = arith.constant 0 : index
    %6 = vector.load %arg9[%c0_6, %c0_7] : memref<8x128xbf16, #tpu.memory_space<vmem>>, vector<8x128xbf16>
    %c0_8 = arith.constant 0 : index
    %c0_9 = arith.constant 0 : index
    %7 = vector.load %arg3[%c0_8, %c0_9] : memref<128x256xbf16, #tpu.memory_space<vmem>>, vector<128x256xbf16>
    %cst = arith.constant dense<0.000000e+00> : vector<8x256xf32>
    %8 = tpu.matmul %6, %7, %cst {dimension_numbers = #tpu.dot_dimension_numbers<[1], [0], [0], [1], [0, 0, 1, 1], [], []>} : vector<8x128xbf16>, vector<128x256xbf16>, vector<8x256xf32> -> vector<8x256xf32>
    %c0_10 = arith.constant 0 : index
    %c0_11 = arith.constant 0 : index
    %9 = vector.load %arg4[%c0_10, %c0_11] : memref<2x256xf32, #tpu.memory_space<vmem>>, vector<1x256xf32>
    %10 = vector.broadcast %9 : vector<1x256xf32> to vector<8x256xf32>
    %11 = arith.addf %8, %10 : vector<8x256xf32>
    %cst_12 = arith.constant 0.000000e+00 : f32
    %12 = vector.broadcast %cst_12 : f32 to vector<8x256xf32>
    %13 = arith.maximumf %11, %12 : vector<8x256xf32>
    %14 = arith.truncf %13 : vector<8x256xf32> to vector<8x256xbf16>
    %c0_13 = arith.constant 0 : index
    %c0_14 = arith.constant 0 : index
    %15 = vector.load %arg5[%c0_13, %c0_14] : memref<256x256xbf16, #tpu.memory_space<vmem>>, vector<256x256xbf16>
    %cst_15 = arith.constant dense<0.000000e+00> : vector<8x256xf32>
    %16 = tpu.matmul %14, %15, %cst_15 {dimension_numbers = #tpu.dot_dimension_numbers<[1], [0], [0], [1], [0, 0, 1, 1], [], []>} : vector<8x256xbf16>, vector<256x256xbf16>, vector<8x256xf32> -> vector<8x256xf32>
    %c1 = arith.constant 1 : index
    %c0_16 = arith.constant 0 : index
    %17 = vector.load %arg4[%c1, %c0_16] : memref<2x256xf32, #tpu.memory_space<vmem>>, vector<1x256xf32>
    %18 = vector.broadcast %17 : vector<1x256xf32> to vector<8x256xf32>
    %19 = arith.addf %16, %18 : vector<8x256xf32>
    %cst_17 = arith.constant 0.000000e+00 : f32
    %20 = vector.broadcast %cst_17 : f32 to vector<8x256xf32>
    %21 = arith.maximumf %19, %20 : vector<8x256xf32>
    %22 = arith.truncf %21 : vector<8x256xf32> to vector<8x256xbf16>
    %c0_18 = arith.constant 0 : index
    %c0_19 = arith.constant 0 : index
    %23 = vector.load %arg6[%c0_18, %c0_19] : memref<256x2xbf16, #tpu.memory_space<vmem>>, vector<256x2xbf16>
    %cst_20 = arith.constant dense<0.000000e+00> : vector<8x2xf32>
    %24 = tpu.matmul %22, %23, %cst_20 {dimension_numbers = #tpu.dot_dimension_numbers<[1], [0], [0], [1], [0, 0, 1, 1], [], []>} : vector<8x256xbf16>, vector<256x2xbf16>, vector<8x2xf32> -> vector<8x2xf32>
    %c0_21 = arith.constant 0 : index
    %c0_22 = arith.constant 0 : index
    %25 = vector.load %arg7[%c0_21, %c0_22] : memref<1x2xf32, #tpu.memory_space<vmem>>, vector<1x2xf32>
    %26 = vector.broadcast %25 : vector<1x2xf32> to vector<8x2xf32>
    %27 = arith.addf %24, %26 : vector<8x2xf32>
    %c0_23 = arith.constant 0 : index
    %c0_24 = arith.constant 0 : index
    %28 = vector.load %arg8[%c0_23, %c0_24] : memref<8x2xf32, #tpu.memory_space<vmem>>, vector<8x2xf32>
    tpu.vector_store %arg8[%c0_23, %c0_24], %27 {strides = array<i32>} : memref<8x2xf32, #tpu.memory_space<vmem>>, vector<8x2xf32>,
    return
  }
  func.func @transform_0(%arg0: i32) -> (i32, i32) {
    %c0_i32 = arith.constant 0 : i32
    %c0_i32_0 = arith.constant 0 : i32
    return %arg0, %c0_i32 : i32, i32
  }
  func.func @transform_1(%arg0: i32) -> (i32, i32) {
    %c0_i32 = arith.constant 0 : i32
    %c0_i32_0 = arith.constant 0 : i32
    return %arg0, %c0_i32 : i32, i32
  }
  func.func @transform_2(%arg0: i32) -> (i32, i32) {
    %c0_i32 = arith.constant 0 : i32
    %c0_i32_0 = arith.constant 0 : i32
    %c0_i32_1 = arith.constant 0 : i32
    return %c0_i32, %c0_i32_0 : i32, i32
  }
  func.func @transform_3(%arg0: i32) -> (i32, i32) {
    %c0_i32 = arith.constant 0 : i32
    %c0_i32_0 = arith.constant 0 : i32
    %c0_i32_1 = arith.constant 0 : i32
    return %c0_i32, %c0_i32_0 : i32, i32
  }
  func.func @transform_4(%arg0: i32) -> (i32, i32) {
    %c0_i32 = arith.constant 0 : i32
    %c0_i32_0 = arith.constant 0 : i32
    %c0_i32_1 = arith.constant 0 : i32
    return %c0_i32, %c0_i32_0 : i32, i32
  }
  func.func @transform_5(%arg0: i32) -> (i32, i32) {
    %c0_i32 = arith.constant 0 : i32
    %c0_i32_0 = arith.constant 0 : i32
    %c0_i32_1 = arith.constant 0 : i32
    return %c0_i32, %c0_i32_0 : i32, i32
  }
  func.func @transform_6(%arg0: i32) -> (i32, i32) {
    %c0_i32 = arith.constant 0 : i32
    %c0_i32_0 = arith.constant 0 : i32
    %c0_i32_1 = arith.constant 0 : i32
    return %c0_i32, %c0_i32_0 : i32, i32
  }
  func.func @transform_7(%arg0: i32) -> (i32, i32) {
    %c0_i32 = arith.constant 0 : i32
    %c0_i32_0 = arith.constant 0 : i32
    return %arg0, %c0_i32 : i32, i32
  }
}

</mosaic_0001>

<llo_original>
// kernel: tpu_custom_call.1
$region0: #{tpu_custom_call.1}
  #allocation0 [shape = 'u32[]', space=smem, size = 0x4, offset = 0x4, fixed_abs, tag = 'smem constant byte address 0x4 - core index']
  #allocation1 [shape = 'u32[72,128]{1,0:T(1,128)}', space=vmem, size = 0x9000, scoped, tag = 'internal scratch']
  #allocation2 [shape = 'bf16[8,128]{1,0:T(8,128)(2,1)}', space=vmem, size = 0x800, scoped, tag = 'scratch operand']
  %s0 = inlined_call_operand.hbm [shape: f32[8,64], index: 0, kind: input, shape index: {}]
  %s1 = inlined_call_operand.hbm [shape: f32[8,64], index: 1, kind: input, shape index: {}]
  %s2 = inlined_call_operand.vmem [shape: bf16[128,256], index: 2, kind: input, shape index: {}]
  %s3 = inlined_call_operand.hbm [shape: f32[2,256], index: 3, kind: input, shape index: {}]
  %s4 = inlined_call_operand.hbm [shape: bf16[256,256], index: 4, kind: input, shape index: {}]
  %s5 = inlined_call_operand.vmem [shape: bf16[256,2], index: 5, kind: input, shape index: {}]
  %s6 = inlined_call_operand.vmem [shape: f32[1,2], index: 6, kind: input, shape index: {}]
  %s7 = inlined_call_operand.vmem [shape: f32[8,2], index: 7, kind: output, shape index: {}]
  %s8 = sld [smem:[#allocation0]]
  $region54: #{tpu_custom_call.1} parent=0
    _
  %s10 = ssub.s32 1, %s8
  %s11 = scalar_select 0, %s10, %s8
  $region1: #{tpu_custom_call.1} parent=0
    #allocation3 [shape = 'u8[4096]{0}', space=vmem, size = 0x1000, scoped, tag = 'input window, operand 0, single buffered']
    #allocation4 [shape = 's32[1]{0}', space=sflag, size = 0x4, scoped, tag = 'scoped memory for tpu_custom_call.1']
    #allocation5 [shape = 'u8[4096]{0}', space=vmem, size = 0x1000, scoped, tag = 'input window, operand 1, single buffered']
    #allocation6 [shape = 's32[1]{0}', space=sflag, size = 0x4, scoped, tag = 'scoped memory for tpu_custom_call.1']
    #allocation7 [shape = 'u8[2048]{0}', space=vmem, size = 0x800, scoped, tag = 'input window, operand 3, single buffered']
    #allocation8 [shape = 'u8[131072]{0}', space=vmem, size = 0x20000, scoped, tag = 'input window, operand 4, single buffered']
    #allocation9 [shape = 's32[1]{0}', space=sflag, size = 0x4, scoped, tag = 'scoped memory for tpu_custom_call.1']
    %12 = vsyncpa [#allocation4], 0
    %13 = vsyncpa [#allocation6], 0
    %14 = vsyncpa [#allocation9], 0
    // Predicated region
    $region2: #{tpu_custom_call.1} parent=1 // pred_check
      _
    $region3: #{tpu_custom_call.1} parent=1 // pred_check_branch
      %16 = sbr.rel (0) target = $region5
    $region4: #{tpu_custom_call.1} parent=1 // pred_region
      %18 = vsyncadd [#allocation4], 0
      %s20 = sshll.u32 %s0, 4
      %s21 = int_to_ptr.hbm [resolvable:$true] %s20
      %s22 = sshll.u32 [#allocation3], 4
      %s23 = int_to_ptr.vmem [resolvable:$true] %s22
      %25 = dma.hbm_to_vmem [thread:$0]  %s21, 128, %s23, [#allocation4]
    $region5: #{tpu_custom_call.1} parent=1 // pred_fallthru
      _
    // Predicated region
    $region6: #{tpu_custom_call.1} parent=1 // pred_check
      _
    $region7: #{tpu_custom_call.1} parent=1 // pred_check_branch
      %27 = sbr.rel (0) target = $region9
    $region8: #{tpu_custom_call.1} parent=1 // pred_region
      %29 = vsyncadd [#allocation6], 0
      %s31 = sshll.u32 %s1, 4
      %s32 = int_to_ptr.hbm [resolvable:$true] %s31
      %s33 = sshll.u32 [#allocation5], 4
      %s34 = int_to_ptr.vmem [resolvable:$true] %s33
      %36 = dma.hbm_to_vmem [thread:$0]  %s32, 128, %s34, [#allocation6]
    $region9: #{tpu_custom_call.1} parent=1 // pred_fallthru
      _
    // Predicated region
    $region10: #{tpu_custom_call.1} parent=1 // pred_check
      _
    $region11: #{tpu_custom_call.1} parent=1 // pred_check_branch
      %38 = sbr.rel (0) target = $region13
    $region12: #{tpu_custom_call.1} parent=1 // pred_region
      _
    $region13: #{tpu_custom_call.1} parent=1 // pred_fallthru
      _
    // Predicated region
    $region14: #{tpu_custom_call.1} parent=1 // pred_check
      _
    $region15: #{tpu_custom_call.1} parent=1 // pred_check_branch
      %40 = sbr.rel (0) target = $region17
    $region16: #{tpu_custom_call.1} parent=1 // pred_region
      %42 = vsyncadd [#allocation6], 0
      %s44 = sshll.u32 %s3, 4
      %s45 = int_to_ptr.hbm [resolvable:$true] %s44
      %s46 = sshll.u32 [#allocation7], 4
      %s47 = int_to_ptr.vmem [resolvable:$true] %s46
      %49 = dma.hbm_to_vmem [thread:$0]  %s45, 64, %s47, [#allocation6]
    $region17: #{tpu_custom_call.1} parent=1 // pred_fallthru
      _
    // Predicated region
    $region18: #{tpu_custom_call.1} parent=1 // pred_check
      _
    $region19: #{tpu_custom_call.1} parent=1 // pred_check_branch
      %51 = sbr.rel (0) target = $region21
    $region20: #{tpu_custom_call.1} parent=1 // pred_region
      %53 = vsyncadd [#allocation9], 0
      %s54 = sshll.u32 %s4, 4
      %s55 = int_to_ptr.hbm [resolvable:$true] %s54
      %s56 = sshll.u32 [#allocation8], 4
      %s57 = int_to_ptr.vmem [resolvable:$true] %s56
      %62 = dma.hbm_to_vmem [thread:$0]  %s55, 4096, %s57, [#allocation9], 128, 128, 8
    $region21: #{tpu_custom_call.1} parent=1 // pred_fallthru
      _
    // Predicated region
    $region22: #{tpu_custom_call.1} parent=1 // pred_check
      _
    $region23: #{tpu_custom_call.1} parent=1 // pred_check_branch
      %64 = sbr.rel (0) target = $region25
    $region24: #{tpu_custom_call.1} parent=1 // pred_region
      _
    $region25: #{tpu_custom_call.1} parent=1 // pred_fallthru
      _
    // Predicated region
    $region26: #{tpu_custom_call.1} parent=1 // pred_check
      _
    $region27: #{tpu_custom_call.1} parent=1 // pred_check_branch
      %66 = sbr.rel (0) target = $region29
    $region28: #{tpu_custom_call.1} parent=1 // pred_region
      _
    $region29: #{tpu_custom_call.1} parent=1 // pred_fallthru
      _
    // Predicated region
    $region30: #{tpu_custom_call.1} parent=1 // pred_check
      _
    $region31: #{tpu_custom_call.1} parent=1 // pred_check_branch
      %68 = sbr.rel (0) target = $region33
    $region32: #{tpu_custom_call.1} parent=1 // pred_region
      %70 = dma.done [#allocation4], 128
    $region33: #{tpu_custom_call.1} parent=1 // pred_fallthru
      _
    // Predicated region
    $region34: #{tpu_custom_call.1} parent=1 // pred_check
      _
    $region35: #{tpu_custom_call.1} parent=1 // pred_check_branch
      %72 = sbr.rel (0) target = $region37
    $region36: #{tpu_custom_call.1} parent=1 // pred_region
      %74 = dma.done [#allocation6], 128
    $region37: #{tpu_custom_call.1} parent=1 // pred_fallthru
      _
    // Predicated region
    $region38: #{tpu_custom_call.1} parent=1 // pred_check
      _
    $region39: #{tpu_custom_call.1} parent=1 // pred_check_branch
      %76 = sbr.rel (0) target = $region41
    $region40: #{tpu_custom_call.1} parent=1 // pred_region
      %78 = dma.done [#allocation6], 64
    $region41: #{tpu_custom_call.1} parent=1 // pred_fallthru
      _
    // Predicated region
    $region42: #{tpu_custom_call.1} parent=1 // pred_check
      _
    $region43: #{tpu_custom_call.1} parent=1 // pred_check_branch
      %80 = sbr.rel (0) target = $region45
    $region44: #{tpu_custom_call.1} parent=1 // pred_region
      %82 = dma.done [#allocation9], 4096
    $region45: #{tpu_custom_call.1} parent=1 // pred_fallthru
      _
    %v83 = vld [vmem:[#allocation3] sm:$0xff]
    %v84 = vpack.c.bf16 %v83, %v83
    %vm85 = vcmask 519168
    %86 = vst.msk [vmem:[#allocation2] sm:$0xf] %vm85, %v84
    %v87 = vld [vmem:[#allocation5] sm:$0xff]
    %v88 = vpack.c.bf16 %v87, %v87
    %90 = vrot.lane.b32.xlu0 %v88, 64
    %v91 = vpop.permute.xlu0 %90
    %vm93 = vcmask 1043968
    %94 = vst.msk [vmem:[#allocation2] sm:$0xf] %vm93, %v91
    %v95 = vld [vmem:[#allocation2] sm:$0xf]
    %v96 = vld [vmem:[%s2] sm:$0xff]
    %v97 = vld [vmem:[%s2 + $0x8] sm:$0xff]
    %v98 = vld [vmem:[%s2 + $0x10] sm:$0xff]
    %v99 = vld [vmem:[%s2 + $0x18] sm:$0xff]
    %v100 = vld [vmem:[%s2 + $0x20] sm:$0xff]
    %v101 = vld [vmem:[%s2 + $0x28] sm:$0xff]
    %v102 = vld [vmem:[%s2 + $0x30] sm:$0xff]
    %v103 = vld [vmem:[%s2 + $0x38] sm:$0xff]
    %v104 = vld [vmem:[%s2 + $0x40] sm:$0xff]
    %v105 = vld [vmem:[%s2 + $0x48] sm:$0xff]
    %v106 = vld [vmem:[%s2 + $0x50] sm:$0xff]
    %v107 = vld [vmem:[%s2 + $0x58] sm:$0xff]
    %v108 = vld [vmem:[%s2 + $0x60] sm:$0xff]
    %v109 = vld [vmem:[%s2 + $0x68] sm:$0xff]
    %v110 = vld [vmem:[%s2 + $0x70] sm:$0xff]
    %v111 = vld [vmem:[%s2 + $0x78] sm:$0xff]
    %v112 = vld [vmem:[#allocation7] ss:$2 sm:$0x3]
    %v114 = vperm.slane %v112, 0
    %v115 = vperm.slane %v112, 1
    %v134 = vunpack.c.l.b16 %v96
    %v135 = vunpack.c.h.b16 %v96
    %v136 = vunpack.c.l.b16 %v97
    %v137 = vunpack.c.h.b16 %v97
    %v138 = vunpack.c.l.b16 %v98
    %v139 = vunpack.c.h.b16 %v98
    %v140 = vunpack.c.l.b16 %v99
    %v141 = vunpack.c.h.b16 %v99
    %v142 = vunpack.c.l.b16 %v100
    %v143 = vunpack.c.h.b16 %v100
    %v144 = vunpack.c.l.b16 %v101
    %v145 = vunpack.c.h.b16 %v101
    %v146 = vunpack.c.l.b16 %v102
    %v147 = vunpack.c.h.b16 %v102
    %v148 = vunpack.c.l.b16 %v103
    %v149 = vunpack.c.h.b16 %v103
    %v150 = vunpack.c.l.b16 %v104
    %v151 = vunpack.c.h.b16 %v104
    %v152 = vunpack.c.l.b16 %v105
    %v153 = vunpack.c.h.b16 %v105
    %v154 = vunpack.c.l.b16 %v106
    %v155 = vunpack.c.h.b16 %v106
    %v156 = vunpack.c.l.b16 %v107
    %v157 = vunpack.c.h.b16 %v107
    %v158 = vunpack.c.l.b16 %v108
    %v159 = vunpack.c.h.b16 %v108
    %v160 = vunpack.c.l.b16 %v109
    %v161 = vunpack.c.h.b16 %v109
    %v162 = vunpack.c.l.b16 %v110
    %v163 = vunpack.c.h.b16 %v110
    %v164 = vunpack.c.l.b16 %v111
    %v165 = vunpack.c.h.b16 %v111
    %v166 = vpack.c.b16 %v136, %v134
    %v167 = vpack.c.b16 %v137, %v135
    %v168 = vpack.c.b16 %v140, %v138
    %v169 = vpack.c.b16 %v141, %v139
    %v170 = vpack.c.b16 %v144, %v142
    %v171 = vpack.c.b16 %v145, %v143
    %v172 = vpack.c.b16 %v148, %v146
    %v173 = vpack.c.b16 %v149, %v147
    %v174 = vpack.c.b16 %v152, %v150
    %v175 = vpack.c.b16 %v153, %v151
    %v176 = vpack.c.b16 %v156, %v154
    %v177 = vpack.c.b16 %v157, %v155
    %v178 = vpack.c.b16 %v160, %v158
    %v179 = vpack.c.b16 %v161, %v159
    %v180 = vpack.c.b16 %v164, %v162
    %v181 = vpack.c.b16 %v165, %v163
    %198 = vmatpush.bf16.msra.mxu0 %v180
    %199 = vmatpush.bf16.msra.mxu0 %v178
    %200 = vmatpush.bf16.msra.mxu0 %v176
    %201 = vmatpush.bf16.msra.mxu0 %v174
    %202 = vmatpush.bf16.msra.mxu0 %v172
    %203 = vmatpush.bf16.msra.mxu0 %v170
    %204 = vmatpush.bf16.msra.mxu0 %v168
    %205 = vmatpush.bf16.msra.mxu0 %v166
    %206 = vmatmul.bf16.gmra.mxu0 %v95
    %v207 = vpop.f32.mrf.mxu0
    %v208 = vadd.f32 %v114, %v207
    %v209 = vpop.f32.mrf.mxu0
    %210 = vdwg.mxu0
    %211 = vmatpush.bf16.msra.mxu0 %v181
    %212 = vmatpush.bf16.msra.mxu0 %v179
    %213 = vmatpush.bf16.msra.mxu0 %v177
    %214 = vmatpush.bf16.msra.mxu0 %v175
    %215 = vmatpush.bf16.msra.mxu0 %v173
    %216 = vmatpush.bf16.msra.mxu0 %v171
    %217 = vmatpush.bf16.msra.mxu0 %v169
    %218 = vmatpush.bf16.msra.mxu0 %v167
    %219 = vmatmul.bf16.gmra.mxu0 %v95
    %v220 = vpop.f32.mrf.mxu0
    %v221 = vadd.f32 %v115, %v220
    %v222 = vpop.f32.mrf.mxu0
    %223 = vdwg.mxu0
    %v224 = vmax.f32 %v208, 0.0
    %v225 = vmax.f32 %v221, 0.0
    %v226 = vpack.c.bf16 %v224, %v224
    %v227 = vpack.c.bf16 %v225, %v225
    %v228 = vld [vmem:[#allocation8] sm:$0xff]
    %v229 = vld [vmem:[#allocation8 + $0x8] sm:$0xff]
    %v230 = vld [vmem:[#allocation8 + $0x10] sm:$0xff]
    %v231 = vld [vmem:[#allocation8 + $0x18] sm:$0xff]
    %v232 = vld [vmem:[#allocation8 + $0x20] sm:$0xff]
    %v233 = vld [vmem:[#allocation8 + $0x28] sm:$0xff]
    %v234 = vld [vmem:[#allocation8 + $0x30] sm:$0xff]
    %v235 = vld [vmem:[#allocation8 + $0x38] sm:$0xff]
    %v236 = vld [vmem:[#allocation8 + $0x40] sm:$0xff]
    %v237 = vld [vmem:[#allocation8 + $0x48] sm:$0xff]
    %v238 = vld [vmem:[#allocation8 + $0x50] sm:$0xff]
    %v239 = vld [vmem:[#allocation8 + $0x58] sm:$0xff]
    %v240 = vld [vmem:[#allocation8 + $0x60] sm:$0xff]
    %v241 = vld [vmem:[#allocation8 + $0x68] sm:$0xff]
    %v242 = vld [vmem:[#allocation8 + $0x70] sm:$0xff]
    %v243 = vld [vmem:[#allocation8 + $0x78] sm:$0xff]
    %v244 = vld [vmem:[#allocation8 + $0x80] sm:$0xff]
    %v245 = vld [vmem:[#allocation8 + $0x88] sm:$0xff]
    %v246 = vld [vmem:[#allocation8 + $0x90] sm:$0xff]
    %v247 = vld [vmem:[#allocation8 + $0x98] sm:$0xff]
    %v248 = vld [vmem:[#allocation8 + $0xa0] sm:$0xff]
    %v249 = vld [vmem:[#allocation8 + $0xa8] sm:$0xff]
    %v250 = vld [vmem:[#allocation8 + $0xb0] sm:$0xff]
    %v251 = vld [vmem:[#allocation8 + $0xb8] sm:$0xff]
    %v252 = vld [vmem:[#allocation8 + $0xc0] sm:$0xff]
    %v253 = vld [vmem:[#allocation8 + $0xc8] sm:$0xff]
    %v254 = vld [vmem:[#allocation8 + $0xd0] sm:$0xff]
    %v255 = vld [vmem:[#allocation8 + $0xd8] sm:$0xff]
    %v256 = vld [vmem:[#allocation8 + $0xe0] sm:$0xff]
    %v257 = vld [vmem:[#allocation8 + $0xe8] sm:$0xff]
    %v258 = vld [vmem:[#allocation8 + $0xf0] sm:$0xff]
    %v259 = vld [vmem:[#allocation8 + $0xf8] sm:$0xff]
    %s260 = scalar_lea.vmem [#allocation7], 1
    %v261 = vld [vmem:[%s260] ss:$2 sm:$0x3]
    %v263 = vperm.slane %v261, 0
    %v264 = vperm.slane %v261, 1
    %v299 = vunpack.c.l.b16 %v228
    %v300 = vunpack.c.h.b16 %v228
    %v301 = vunpack.c.l.b16 %v229
    %v302 = vunpack.c.h.b16 %v229
    %v303 = vunpack.c.l.b16 %v230
    %v304 = vunpack.c.h.b16 %v230
    %v305 = vunpack.c.l.b16 %v231
    %v306 = vunpack.c.h.b16 %v231
    %v307 = vunpack.c.l.b16 %v232
    %v308 = vunpack.c.h.b16 %v232
    %v309 = vunpack.c.l.b16 %v233
    %v310 = vunpack.c.h.b16 %v233
    %v311 = vunpack.c.l.b16 %v234
    %v312 = vunpack.c.h.b16 %v234
    %v313 = vunpack.c.l.b16 %v235
    %v314 = vunpack.c.h.b16 %v235
    %v315 = vunpack.c.l.b16 %v236
    %v316 = vunpack.c.h.b16 %v236
    %v317 = vunpack.c.l.b16 %v237
    %v318 = vunpack.c.h.b16 %v237
    %v319 = vunpack.c.l.b16 %v238
    %v320 = vunpack.c.h.b16 %v238
    %v321 = vunpack.c.l.b16 %v239
    %v322 = vunpack.c.h.b16 %v239
    %v323 = vunpack.c.l.b16 %v240
    %v324 = vunpack.c.h.b16 %v240
    %v325 = vunpack.c.l.b16 %v241
    %v326 = vunpack.c.h.b16 %v241
    %v327 = vunpack.c.l.b16 %v242
    %v328 = vunpack.c.h.b16 %v242
    %v329 = vunpack.c.l.b16 %v243
    %v330 = vunpack.c.h.b16 %v243
    %v331 = vunpack.c.l.b16 %v244
    %v332 = vunpack.c.h.b16 %v244
    %v333 = vunpack.c.l.b16 %v245
    %v334 = vunpack.c.h.b16 %v245
    %v335 = vunpack.c.l.b16 %v246
    %v336 = vunpack.c.h.b16 %v246
    %v337 = vunpack.c.l.b16 %v247
    %v338 = vunpack.c.h.b16 %v247
    %v339 = vunpack.c.l.b16 %v248
    %v340 = vunpack.c.h.b16 %v248
    %v341 = vunpack.c.l.b16 %v249
    %v342 = vunpack.c.h.b16 %v249
    %v343 = vunpack.c.l.b16 %v250
    %v344 = vunpack.c.h.b16 %v250
    %v345 = vunpack.c.l.b16 %v251
    %v346 = vunpack.c.h.b16 %v251
    %v347 = vunpack.c.l.b16 %v252
    %v348 = vunpack.c.h.b16 %v252
    %v349 = vunpack.c.l.b16 %v253
    %v350 = vunpack.c.h.b16 %v253
    %v351 = vunpack.c.l.b16 %v254
    %v352 = vunpack.c.h.b16 %v254
    %v353 = vunpack.c.l.b16 %v255
    %v354 = vunpack.c.h.b16 %v255
    %v355 = vunpack.c.l.b16 %v256
    %v356 = vunpack.c.h.b16 %v256
    %v357 = vunpack.c.l.b16 %v257
    %v358 = vunpack.c.h.b16 %v257
    %v359 = vunpack.c.l.b16 %v258
    %v360 = vunpack.c.h.b16 %v258
    %v361 = vunpack.c.l.b16 %v259
    %v362 = vunpack.c.h.b16 %v259
    %v363 = vpack.c.b16 %v301, %v299
    %v364 = vpack.c.b16 %v302, %v300
    %v365 = vpack.c.b16 %v305, %v303
    %v366 = vpack.c.b16 %v306, %v304
    %v367 = vpack.c.b16 %v309, %v307
    %v368 = vpack.c.b16 %v310, %v308
    %v369 = vpack.c.b16 %v313, %v311
    %v370 = vpack.c.b16 %v314, %v312
    %v371 = vpack.c.b16 %v317, %v315
    %v372 = vpack.c.b16 %v318, %v316
    %v373 = vpack.c.b16 %v321, %v319
    %v374 = vpack.c.b16 %v322, %v320
    %v375 = vpack.c.b16 %v325, %v323
    %v376 = vpack.c.b16 %v326, %v324
    %v377 = vpack.c.b16 %v329, %v327
    %v378 = vpack.c.b16 %v330, %v328
    %v379 = vpack.c.b16 %v333, %v331
    %v380 = vpack.c.b16 %v334, %v332
    %v381 = vpack.c.b16 %v337, %v335
    %v382 = vpack.c.b16 %v338, %v336
    %v383 = vpack.c.b16 %v341, %v339
    %v384 = vpack.c.b16 %v342, %v340
    %v385 = vpack.c.b16 %v345, %v343
    %v386 = vpack.c.b16 %v346, %v344
    %v387 = vpack.c.b16 %v349, %v347
    %v388 = vpack.c.b16 %v350, %v348
    %v389 = vpack.c.b16 %v353, %v351
    %v390 = vpack.c.b16 %v354, %v352
    %v391 = vpack.c.b16 %v357, %v355
    %v392 = vpack.c.b16 %v358, %v356
    %v393 = vpack.c.b16 %v361, %v359
    %v394 = vpack.c.b16 %v362, %v360
    %427 = vmatpush.bf16.msra.mxu0 %v377
    %428 = vmatpush.bf16.msra.mxu0 %v375
    %429 = vmatpush.bf16.msra.mxu0 %v373
    %430 = vmatpush.bf16.msra.mxu0 %v371
    %431 = vmatpush.bf16.msra.mxu0 %v369
    %432 = vmatpush.bf16.msra.mxu0 %v367
    %433 = vmatpush.bf16.msra.mxu0 %v365
    %434 = vmatpush.bf16.msra.mxu0 %v363
    %435 = vmatmul.bf16.gmra.mxu0 %v226
    %v436 = vpop.f32.mrf.mxu0
    %v437 = vadd.f32 %v263, %v436
    %v438 = vpop.f32.mrf.mxu0
    %439 = vdwg.mxu0
    %440 = vmatpush.bf16.msra.mxu0 %v393
    %441 = vmatpush.bf16.msra.mxu0 %v391
    %442 = vmatpush.bf16.msra.mxu0 %v389
    %443 = vmatpush.bf16.msra.mxu0 %v387
    %444 = vmatpush.bf16.msra.mxu0 %v385
    %445 = vmatpush.bf16.msra.mxu0 %v383
    %446 = vmatpush.bf16.msra.mxu0 %v381
    %447 = vmatpush.bf16.msra.mxu0 %v379
    %448 = vmatmul.bf16.gmra.mxu0 %v227
    %v449 = vpop.f32.mrf.mxu0
    %v450 = vadd.f32 %v437, %v449
    %v451 = vpop.f32.mrf.mxu0
    %452 = vdwg.mxu0
    %453 = vmatpush.bf16.msra.mxu0 %v378
    %454 = vmatpush.bf16.msra.mxu0 %v376
    %455 = vmatpush.bf16.msra.mxu0 %v374
    %456 = vmatpush.bf16.msra.mxu0 %v372
    %457 = vmatpush.bf16.msra.mxu0 %v370
    %458 = vmatpush.bf16.msra.mxu0 %v368
    %459 = vmatpush.bf16.msra.mxu0 %v366
    %460 = vmatpush.bf16.msra.mxu0 %v364
    %461 = vmatmul.bf16.gmra.mxu0 %v226
    %v462 = vpop.f32.mrf.mxu0
    %v463 = vadd.f32 %v264, %v462
    %v464 = vpop.f32.mrf.mxu0
    %465 = vdwg.mxu0
    %466 = vmatpush.bf16.msra.mxu0 %v394
    %467 = vmatpush.bf16.msra.mxu0 %v392
    %468 = vmatpush.bf16.msra.mxu0 %v390
    %469 = vmatpush.bf16.msra.mxu0 %v388
    %470 = vmatpush.bf16.msra.mxu0 %v386
    %471 = vmatpush.bf16.msra.mxu0 %v384
    %472 = vmatpush.bf16.msra.mxu0 %v382
    %473 = vmatpush.bf16.msra.mxu0 %v380
    %474 = vmatmul.bf16.gmra.mxu0 %v227
    %v475 = vpop.f32.mrf.mxu0
    %v476 = vadd.f32 %v463, %v475
    %v477 = vpop.f32.mrf.mxu0
    %478 = vdwg.mxu0
    %v479 = vmax.f32 %v450, 0.0
    %v480 = vmax.f32 %v476, 0.0
    %v481 = vpack.c.bf16 %v479, %v479
    %v482 = vpack.c.bf16 %v480, %v480
    %v483 = vld [vmem:[%s5] sm:$0xf]
    %v484 = vld [vmem:[%s5 + $0x4] sm:$0xf]
    %v485 = vld [vmem:[%s5 + $0x8] sm:$0xf]
    %v486 = vld [vmem:[%s5 + $0xc] sm:$0xf]
    %v487 = vld [vmem:[%s5 + $0x10] sm:$0xf]
    %v488 = vld [vmem:[%s5 + $0x14] sm:$0xf]
    %v489 = vld [vmem:[%s5 + $0x18] sm:$0xf]
    %v490 = vld [vmem:[%s5 + $0x1c] sm:$0xf]
    %v491 = vld [vmem:[%s5 + $0x20] sm:$0xf]
    %v492 = vld [vmem:[%s5 + $0x24] sm:$0xf]
    %v493 = vld [vmem:[%s5 + $0x28] sm:$0xf]
    %v494 = vld [vmem:[%s5 + $0x2c] sm:$0xf]
    %v495 = vld [vmem:[%s5 + $0x30] sm:$0xf]
    %v496 = vld [vmem:[%s5 + $0x34] sm:$0xf]
    %v497 = vld [vmem:[%s5 + $0x38] sm:$0xf]
    %v498 = vld [vmem:[%s5 + $0x3c] sm:$0xf]
    %v499 = vld [vmem:[%s5 + $0x40] sm:$0xf]
    %v500 = vld [vmem:[%s5 + $0x44] sm:$0xf]
    %v501 = vld [vmem:[%s5 + $0x48] sm:$0xf]
    %v502 = vld [vmem:[%s5 + $0x4c] sm:$0xf]
    %v503 = vld [vmem:[%s5 + $0x50] sm:$0xf]
    %v504 = vld [vmem:[%s5 + $0x54] sm:$0xf]
    %v505 = vld [vmem:[%s5 + $0x58] sm:$0xf]
    %v506 = vld [vmem:[%s5 + $0x5c] sm:$0xf]
    %v507 = vld [vmem:[%s5 + $0x60] sm:$0xf]
    %v508 = vld [vmem:[%s5 + $0x64] sm:$0xf]
    %v509 = vld [vmem:[%s5 + $0x68] sm:$0xf]
    %v510 = vld [vmem:[%s5 + $0x6c] sm:$0xf]
    %v511 = vld [vmem:[%s5 + $0x70] sm:$0xf]
    %v512 = vld [vmem:[%s5 + $0x74] sm:$0xf]
    %v513 = vld [vmem:[%s5 + $0x78] sm:$0xf]
    %v514 = vld [vmem:[%s5 + $0x7c] sm:$0xf]
    %v515 = vld [vmem:[%s6] sm:$0x1]
    %v517 = vperm.slane %v515, 0
    %v551 = vunpack.c.l.b16 %v483
    %v552 = vunpack.c.l.b16 %v484
    %v553 = vunpack.c.l.b16 %v485
    %v554 = vunpack.c.l.b16 %v486
    %v555 = vunpack.c.l.b16 %v487
    %v556 = vunpack.c.l.b16 %v488
    %v557 = vunpack.c.l.b16 %v489
    %v558 = vunpack.c.l.b16 %v490
    %v559 = vunpack.c.l.b16 %v491
    %v560 = vunpack.c.l.b16 %v492
    %v561 = vunpack.c.l.b16 %v493
    %v562 = vunpack.c.l.b16 %v494
    %v563 = vunpack.c.l.b16 %v495
    %v564 = vunpack.c.l.b16 %v496
    %v565 = vunpack.c.l.b16 %v497
    %v566 = vunpack.c.l.b16 %v498
    %v567 = vunpack.c.l.b16 %v499
    %v568 = vunpack.c.l.b16 %v500
    %v569 = vunpack.c.l.b16 %v501
    %v570 = vunpack.c.l.b16 %v502
    %v571 = vunpack.c.l.b16 %v503
    %v572 = vunpack.c.l.b16 %v504
    %v573 = vunpack.c.l.b16 %v505
    %v574 = vunpack.c.l.b16 %v506
    %v575 = vunpack.c.l.b16 %v507
    %v576 = vunpack.c.l.b16 %v508
    %v577 = vunpack.c.l.b16 %v509
    %v578 = vunpack.c.l.b16 %v510
    %v579 = vunpack.c.l.b16 %v511
    %v580 = vunpack.c.l.b16 %v512
    %v581 = vunpack.c.l.b16 %v513
    %v582 = vunpack.c.l.b16 %v514
    %v583 = vpack.c.b16 %v552, %v551
    %v584 = vpack.c.b16 %v554, %v553
    %v585 = vpack.c.b16 %v556, %v555
    %v586 = vpack.c.b16 %v558, %v557
    %v587 = vpack.c.b16 %v560, %v559
    %v588 = vpack.c.b16 %v562, %v561
    %v589 = vpack.c.b16 %v564, %v563
    %v590 = vpack.c.b16 %v566, %v565
    %v591 = vpack.c.b16 %v568, %v567
    %v592 = vpack.c.b16 %v570, %v569
    %v593 = vpack.c.b16 %v572, %v571
    %v594 = vpack.c.b16 %v574, %v573
    %v595 = vpack.c.b16 %v576, %v575
    %v596 = vpack.c.b16 %v578, %v577
    %v597 = vpack.c.b16 %v580, %v579
    %v598 = vpack.c.b16 %v582, %v581
    %615 = vmatpush.bf16.msra.mxu0 %v590
    %616 = vmatpush.bf16.msra.mxu0 %v589
    %617 = vmatpush.bf16.msra.mxu0 %v588
    %618 = vmatpush.bf16.msra.mxu0 %v587
    %619 = vmatpush.bf16.msra.mxu0 %v586
    %620 = vmatpush.bf16.msra.mxu0 %v585
    %621 = vmatpush.bf16.msra.mxu0 %v584
    %622 = vmatpush.bf16.msra.mxu0 %v583
    %623 = vmatmul.bf16.gmra.mxu0 %v481
    %v624 = vpop.f32.mrf.mxu0
    %v625 = vadd.f32 %v517, %v624
    %v626 = vpop.f32.mrf.mxu0
    %627 = vdwg.mxu0
    %628 = vmatpush.bf16.msra.mxu0 %v598
    %629 = vmatpush.bf16.msra.mxu0 %v597
    %630 = vmatpush.bf16.msra.mxu0 %v596
    %631 = vmatpush.bf16.msra.mxu0 %v595
    %632 = vmatpush.bf16.msra.mxu0 %v594
    %633 = vmatpush.bf16.msra.mxu0 %v593
    %634 = vmatpush.bf16.msra.mxu0 %v592
    %635 = vmatpush.bf16.msra.mxu0 %v591
    %636 = vmatmul.bf16.gmra.mxu0 %v482
    %v637 = vpop.f32.mrf.mxu0
    %v638 = vadd.f32 %v625, %v637
    %v639 = vpop.f32.mrf.mxu0
    %640 = vdwg.mxu0
    %vm641 = vcmask 15360
    %642 = vst.msk [vmem:[%s7] sm:$0xff] %vm641, %v638
    // Predicated region
    $region46: #{tpu_custom_call.1} parent=1 // pred_check
      _
    $region47: #{tpu_custom_call.1} parent=1 // pred_check_branch
      %644 = sbr.rel (0) target = $region49
    $region48: #{tpu_custom_call.1} parent=1 // pred_region
      _
    $region49: #{tpu_custom_call.1} parent=1 // pred_fallthru
      _
    // Predicated region
    $region50: #{tpu_custom_call.1} parent=1 // pred_check
      _
    $region51: #{tpu_custom_call.1} parent=1 // pred_check_branch
      %646 = sbr.rel (0) target = $region53
    $region52: #{tpu_custom_call.1} parent=1 // pred_region
      _
    $region53: #{tpu_custom_call.1} parent=1 // pred_fallthru
      _
    %647 = vsyncpa [#allocation4], 1
    %648 = vsyncpa [#allocation6], 1
    %649 = vsyncpa [#allocation9], 1

</llo_original>
